<compile_context>
chip_gen: v5e
topology: v5e:2x2
jax: 0.10.0
libtpu: 0.0.40
codegen_flags: <defaults>
</compile_context>

<pallas_src>
import functools

import jax
import jax.numpy as jnp
from jax.experimental import pallas as pl
from jax.experimental.pallas import tpu as pltpu


def _round_up(v: int, m: int) -> int:
    return (v + m - 1) // m * m


def _vmem_capacity_bytes() -> int:
    try:
        return int(pltpu.get_tpu_info().vmem_capacity_bytes)
    except Exception:
        return 64 * 1024 * 1024  # conservative fallback (v7x per-core VMEM)


# --------------------------------------------------------------------------- #
# Kernels
# --------------------------------------------------------------------------- #
def _stats_kernel(x_ref, gamma_ref, beta_ref, scale_ref, shift_ref,
                  sum_acc, sq_acc, *, n_valid: int, tile_n: int, eps: float,
                  mask_rows: bool):
    """Pass 1: per-channel sum / sum-of-squares over the node axis, finalized
    into fused (scale, shift) vectors."""
    ni = pl.program_id(1)  # node-axis (reduction) grid position, innermost

    @pl.when(ni == 0)
    def _():
        sum_acc[...] = jnp.zeros_like(sum_acc)
        sq_acc[...] = jnp.zeros_like(sq_acc)

    x = x_ref[...].astype(jnp.float32)                     # [tile_n, tile_c]
    if mask_rows:
        # Ragged last node tile: rows >= n_valid hold unspecified VMEM data;
        # select (not multiply) so NaN/Inf garbage cannot leak into the sums.
        rows = jax.lax.broadcasted_iota(jnp.int32, x.shape, 0)
        x = jnp.where(ni * tile_n + rows < n_valid, x, 0.0)

    ones = jnp.ones((1, x.shape[0]), jnp.float32)
    # Sublane (node) reductions via ones-matmul -> MXU, keeping VPU/XLU free;
    # f32 accumulation.
    sum_acc[...] += jnp.dot(ones, x, preferred_element_type=jnp.float32)
    sq_acc[...] += jnp.dot(ones, x * x, preferred_element_type=jnp.float32)

    @pl.when(ni == pl.num_programs(1) - 1)
    def _():
        inv_n = jnp.float32(1.0 / n_valid)
        mean = sum_acc[...] * inv_n
        var = jnp.maximum(sq_acc[...] * inv_n - mean * mean, 0.0)
        inv_std = jax.lax.rsqrt(var + jnp.float32(eps))
        scale = gamma_ref[...] * inv_std
        scale_ref[...] = scale
        shift_ref[...] = beta_ref[...] - mean * scale


def _normalize_kernel(x_ref, scale_ref, shift_ref, o_ref):
    """Pass 2: y = x * scale + shift (fused affine)."""
    x = x_ref[...].astype(jnp.float32)
    o_ref[...] = (x * scale_ref[...] + shift_ref[...]).astype(o_ref.dtype)


def _fused_kernel(x_ref, gamma_ref, beta_ref, o_ref, *, n_valid: int, eps: float):
    """Single pass: stats + normalize for one channel tile holding all N rows
    (block row dim == full array dim, so no row masking needed)."""
    x = x_ref[...].astype(jnp.float32)                     # [N, tile_c]
    ones = jnp.ones((1, x.shape[0]), jnp.float32)
    s = jnp.dot(ones, x, preferred_element_type=jnp.float32)
    sq = jnp.dot(ones, x * x, preferred_element_type=jnp.float32)
    inv_n = jnp.float32(1.0 / n_valid)
    mean = s * inv_n
    var = jnp.maximum(sq * inv_n - mean * mean, 0.0)
    inv_std = jax.lax.rsqrt(var + jnp.float32(eps))
    scale = gamma_ref[...] * inv_std
    shift = beta_ref[...] - mean * scale
    o_ref[...] = (x * scale + shift).astype(o_ref.dtype)


# --------------------------------------------------------------------------- #
# Wrapper
# --------------------------------------------------------------------------- #
def batch_norm(x: jax.Array, gamma: jax.Array, beta: jax.Array,
               eps: float = 1e-5, *, force_two_pass: bool = False) -> jax.Array:
    """BatchNorm forward (training-mode batch statistics). x: [N, C]."""
    n, c = x.shape
    out_dtype = x.dtype
    in_b = x.dtype.itemsize
    out_b = jnp.dtype(out_dtype).itemsize

    vmem_cap = _vmem_capacity_bytes()
    vmem_limit = min(vmem_cap * 3 // 4, 96 * 1024 * 1024)   # 48 MiB v7x, 96 MiB v5e/v6e
    vmem_budget = int(vmem_limit * 0.7)                      # headroom for compiler temps

    # ---- fused single-pass path ---------------------------------------------
    # One channel-tile column of x (all N rows) + output block + f32 temps fit
    # in VMEM: 1 read + 1 write of x instead of 2 reads + 1 write.
    fused_tile_c = 128
    fused_per_elem = 2 * in_b + 2 * out_b + 8   # dbuf in, dbuf out, ~2 f32 temps
    if (not force_two_pass) and n * fused_tile_c * fused_per_elem <= vmem_budget:
        tile_c = fused_tile_c
        c_tiles = pl.cdiv(c, tile_c)
        c_pad = c_tiles * tile_c
        gamma_p = jnp.pad(gamma.astype(jnp.float32), (0, c_pad - c)).reshape(1, c_pad)
        beta_p = jnp.pad(beta.astype(jnp.float32), (0, c_pad - c)).reshape(1, c_pad)
        return pl.pallas_call(
            functools.partial(_fused_kernel, n_valid=n, eps=eps),
            out_shape=jax.ShapeDtypeStruct((n, c), out_dtype),
            grid_spec=pltpu.PrefetchScalarGridSpec(
                num_scalar_prefetch=0,
                grid=(c_tiles,),
                in_specs=[
                    pl.BlockSpec((n, tile_c), lambda j: (0, j)),
                    pl.BlockSpec((1, tile_c), lambda j: (0, j)),
                    pl.BlockSpec((1, tile_c), lambda j: (0, j)),
                ],
                out_specs=pl.BlockSpec((n, tile_c), lambda j: (0, j)),
            ),
            compiler_params=pltpu.CompilerParams(
                dimension_semantics=("parallel",),
                vmem_limit_bytes=int(vmem_limit)),
        )(x, gamma_p, beta_p)

    # ---- channel tiling (lane-dense, <=128 lanes of raggedness, and >=2 tiles
    #      when C > 128 so the "parallel" axis feeds both v7x TensorCores) -----
    c128 = _round_up(c, 128)
    if c128 <= 256:
        tile_c = 128
    elif c128 <= 1024:
        tile_c = 256
    else:
        tile_c = 512
    c_tiles = pl.cdiv(c, tile_c)
    c_pad = c_tiles * tile_c
    gamma_p = jnp.pad(gamma.astype(jnp.float32), (0, c_pad - c)).reshape(1, c_pad)
    beta_p = jnp.pad(beta.astype(jnp.float32), (0, c_pad - c)).reshape(1, c_pad)

    # ---- node tiling, budgeted in bytes per pass -----------------------------
    def node_tile(per_elem_bytes: int, max_block_bytes: int) -> int:
        t = min(vmem_budget // (tile_c * per_elem_bytes),
                max_block_bytes // (tile_c * in_b))
        t = max(8, (t // 8) * 8)
        return min(t, _round_up(n, 8))

    # pass 1: only x is double-buffered (+ ~2 full-tile f32 temps in the body)
    tile_n1 = node_tile(2 * in_b + 8, 16 * 1024 * 1024)
    # pass 2: x and y double-buffered (+ ~1 f32 temp)
    tile_n2 = node_tile(2 * in_b + 2 * out_b + 4, 8 * 1024 * 1024)

    # ---- pass 1: per-channel batch stats -> fused (scale, shift) -------------
    # TODO(synk): when c_tiles == 1 on v7x, pass 1 runs on a single TensorCore;
    # a 2-way node split with partial sums would recover the second core.
    scale, shift = pl.pallas_call(
        functools.partial(_stats_kernel, n_valid=n, tile_n=tile_n1, eps=eps,
                          mask_rows=(n % tile_n1 != 0)),
        out_shape=(jax.ShapeDtypeStruct((1, c_pad), jnp.float32),
                   jax.ShapeDtypeStruct((1, c_pad), jnp.float32)),
        grid_spec=pltpu.PrefetchScalarGridSpec(
            num_scalar_prefetch=0,
            grid=(c_tiles, pl.cdiv(n, tile_n1)),
            in_specs=[
                pl.BlockSpec((tile_n1, tile_c), lambda j, i: (i, j)),
                pl.BlockSpec((1, tile_c), lambda j, i: (0, j)),
                pl.BlockSpec((1, tile_c), lambda j, i: (0, j)),
            ],
            out_specs=[
                pl.BlockSpec((1, tile_c), lambda j, i: (0, j)),
                pl.BlockSpec((1, tile_c), lambda j, i: (0, j)),
            ],
            scratch_shapes=[pltpu.VMEM((1, tile_c), jnp.float32),
                            pltpu.VMEM((1, tile_c), jnp.float32)],
        ),
        compiler_params=pltpu.CompilerParams(
            dimension_semantics=("parallel", "arbitrary"),
            vmem_limit_bytes=int(vmem_limit)),
    )(x, gamma_p, beta_p)

    # ---- pass 2: stream x again and normalize (ragged stores are masked) -----
    y = pl.pallas_call(
        _normalize_kernel,
        out_shape=jax.ShapeDtypeStruct((n, c), out_dtype),
        grid_spec=pltpu.PrefetchScalarGridSpec(
            num_scalar_prefetch=0,
            grid=(c_tiles, pl.cdiv(n, tile_n2)),
            in_specs=[
                pl.BlockSpec((tile_n2, tile_c), lambda j, i: (i, j)),
                pl.BlockSpec((1, tile_c), lambda j, i: (0, j)),
                pl.BlockSpec((1, tile_c), lambda j, i: (0, j)),
            ],
            out_specs=pl.BlockSpec((tile_n2, tile_c), lambda j, i: (i, j)),
        ),
        compiler_params=pltpu.CompilerParams(
            dimension_semantics=("parallel", "parallel"),
            vmem_limit_bytes=int(vmem_limit)),
    )(x, scale, shift)
    return y


# --------------------------------------------------------------------------- #
# Test
# --------------------------------------------------------------------------- #
def _reference(x, gamma, beta, eps):
    xf = x.astype(jnp.float32)
    mean = jnp.mean(xf, axis=0, keepdims=True)
    var = jnp.mean((xf - mean) ** 2, axis=0, keepdims=True)
    return (xf - mean) / jnp.sqrt(var + eps) * gamma.astype(jnp.float32) \
        + beta.astype(jnp.float32)


if __name__ == "__main__":
    key = jax.random.PRNGKey(0)
    k1, k2, k3, k4 = jax.random.split(key, 4)
    eps = 1e-5

    # Case 1: module-sized example (fused single-pass path).
    x1 = jax.random.normal(k1, (32, 16), dtype=jnp.float32)
    g1 = jnp.ones((16,), jnp.float32)          # BatchNorm1d default init
    b1 = jnp.zeros((16,), jnp.float32)
    out1 = jax.block_until_ready(batch_norm(x1, g1, b1, eps=eps))
    ref1 = _reference(x1, g1, b1, eps)
    assert out1.shape == ref1.shape
    assert jnp.allclose(out1, ref1, atol=2e-5, rtol=1e-4), \
        float(jnp.max(jnp.abs(out1 - ref1)))

    # Case 2: ragged node + channel tiles, forced two-pass streaming path.
    x2 = jax.random.normal(k2, (1000, 300), dtype=jnp.float32) * 2.0 + 0.5
    g2 = jax.random.normal(k3, (300,), dtype=jnp.float32)
    b2 = jax.random.normal(k4, (300,), dtype=jnp.float32)
    out2 = jax.block_until_ready(batch_norm(x2, g2, b2, eps=eps,
                                            force_two_pass=True))
    ref2 = _reference(x2, g2, b2, eps)
    assert out2.shape == ref2.shape
    assert jnp.allclose(out2, ref2, atol=2e-3, rtol=2e-3), \
        float(jnp.max(jnp.abs(out2 - ref2)))

    # Case 3: bf16 input, fused path with a ragged channel tile.
    x3 = jax.random.normal(k3, (200, 130), dtype=jnp.bfloat16)
    g3 = jnp.ones((130,), jnp.float32)
    b3 = jnp.zeros((130,), jnp.float32)
    out3 = jax.block_until_ready(batch_norm(x3, g3, b3, eps=eps))
    ref3 = _reference(x3, g3, b3, eps)
    assert out3.shape == ref3.shape and out3.dtype == x3.dtype
    assert jnp.allclose(out3.astype(jnp.float32), ref3, atol=5e-2, rtol=5e-2), \
        float(jnp.max(jnp.abs(out3.astype(jnp.float32) - ref3)))

    print("KERNEL_OK")
</pallas_src>

<mosaic_0001>
module attributes {stable_mosaic.version = 11 : i64} {
  func.func @_fused_kernel(%arg0: i32, %arg1: memref<32x128xf32, #tpu.memory_space<vmem>>, %arg2: memref<1x128xf32, #tpu.memory_space<vmem>>, %arg3: memref<1x128xf32, #tpu.memory_space<vmem>>, %arg4: memref<32x128xf32, #tpu.memory_space<vmem>>) attributes {dimension_semantics = [#tpu.dimension_semantics<parallel>], iteration_bounds = array<i64: 1>, scalar_prefetch = 0 : i64, scratch_operands = 0 : i64, tpu.core_type = #tpu.core_type<tc>, window_params = [{transform_indices = @transform_0, window_bounds = array<i64: 32, 128>}, {transform_indices = @transform_1, window_bounds = array<i64: 1, 128>}, {transform_indices = @transform_2, window_bounds = array<i64: 1, 128>}, {transform_indices = @transform_3, window_bounds = array<i64: 32, 128>}]} {
    %c0 = arith.constant 0 : index
    %c0_0 = arith.constant 0 : index
    %0 = vector.load %arg1[%c0, %c0_0] : memref<32x128xf32, #tpu.memory_space<vmem>>, vector<32x128xf32>
    %cst = arith.constant 1.000000e+00 : f32
    %1 = vector.broadcast %cst : f32 to vector<1x32xf32>
    %cst_1 = arith.constant dense<0.000000e+00> : vector<1x128xf32>
    %2 = tpu.matmul %1, %0, %cst_1 {dimension_numbers = #tpu.dot_dimension_numbers<[1], [0], [0], [1], [0, 0, 1, 1], [], []>} : vector<1x32xf32>, vector<32x128xf32>, vector<1x128xf32> -> vector<1x128xf32>
    %3 = arith.mulf %0, %0 : vector<32x128xf32>
    %cst_2 = arith.constant dense<0.000000e+00> : vector<1x128xf32>
    %4 = tpu.matmul %1, %3, %cst_2 {dimension_numbers = #tpu.dot_dimension_numbers<[1], [0], [0], [1], [0, 0, 1, 1], [], []>} : vector<1x32xf32>, vector<32x128xf32>, vector<1x128xf32> -> vector<1x128xf32>
    %cst_3 = arith.constant 3.125000e-02 : f32
    %5 = vector.broadcast %cst_3 : f32 to vector<1x128xf32>
    %6 = arith.mulf %2, %5 : vector<1x128xf32>
    %cst_4 = arith.constant 3.125000e-02 : f32
    %7 = vector.broadcast %cst_4 : f32 to vector<1x128xf32>
    %8 = arith.mulf %4, %7 : vector<1x128xf32>
    %9 = arith.mulf %6, %6 : vector<1x128xf32>
    %10 = arith.subf %8, %9 : vector<1x128xf32>
    %cst_5 = arith.constant 0.000000e+00 : f32
    %11 = vector.broadcast %cst_5 : f32 to vector<1x128xf32>
    %12 = arith.maximumf %10, %11 : vector<1x128xf32>
    %cst_6 = arith.constant 9.99999974E-6 : f32
    %13 = vector.broadcast %cst_6 : f32 to vector<1x128xf32>
    %14 = arith.addf %12, %13 : vector<1x128xf32>
    %15 = math.rsqrt %14 : vector<1x128xf32>
    %c0_7 = arith.constant 0 : index
    %c0_8 = arith.constant 0 : index
    %16 = vector.load %arg2[%c0_7, %c0_8] : memref<1x128xf32, #tpu.memory_space<vmem>>, vector<1x128xf32>
    %17 = arith.mulf %16, %15 : vector<1x128xf32>
    %c0_9 = arith.constant 0 : index
    %c0_10 = arith.constant 0 : index
    %18 = vector.load %arg3[%c0_9, %c0_10] : memref<1x128xf32, #tpu.memory_space<vmem>>, vector<1x128xf32>
    %19 = arith.mulf %6, %17 : vector<1x128xf32>
    %20 = arith.subf %18, %19 : vector<1x128xf32>
    %21 = vector.broadcast %17 : vector<1x128xf32> to vector<32x128xf32>
    %22 = arith.mulf %0, %21 : vector<32x128xf32>
    %23 = vector.broadcast %20 : vector<1x128xf32> to vector<32x128xf32>
    %24 = arith.addf %22, %23 : vector<32x128xf32>
    %c0_11 = arith.constant 0 : index
    %c0_12 = arith.constant 0 : index
    %25 = vector.load %arg4[%c0_11, %c0_12] : memref<32x128xf32, #tpu.memory_space<vmem>>, vector<32x128xf32>
    tpu.vector_store %arg4[%c0_11, %c0_12], %24 {strides = array<i32>} : memref<32x128xf32, #tpu.memory_space<vmem>>, vector<32x128xf32>,
    return
  }
  func.func @transform_0(%arg0: i32) -> (i32, i32) {
    %c0_i32 = arith.constant 0 : i32
    %c0_i32_0 = arith.constant 0 : i32
    return %c0_i32, %arg0 : i32, i32
  }
  func.func @transform_1(%arg0: i32) -> (i32, i32) {
    %c0_i32 = arith.constant 0 : i32
    %c0_i32_0 = arith.constant 0 : i32
    return %c0_i32, %arg0 : i32, i32
  }
  func.func @transform_2(%arg0: i32) -> (i32, i32) {
    %c0_i32 = arith.constant 0 : i32
    %c0_i32_0 = arith.constant 0 : i32
    return %c0_i32, %arg0 : i32, i32
  }
  func.func @transform_3(%arg0: i32) -> (i32, i32) {
    %c0_i32 = arith.constant 0 : i32
    %c0_i32_0 = arith.constant 0 : i32
    return %c0_i32, %arg0 : i32, i32
  }
}

</mosaic_0001>

<llo_original>
// kernel: tpu_custom_call.1
$region0: #{tpu_custom_call.1}
  #allocation0 [shape = 'u32[]', space=smem, size = 0x4, offset = 0x4, fixed_abs, tag = 'smem constant byte address 0x4 - core index']
  #allocation1 [shape = 'u32[72,128]{1,0:T(1,128)}', space=vmem, size = 0x9000, scoped, tag = 'internal scratch']
  %s0 = inlined_call_operand.vmem [shape: f32[32,16], index: 0, kind: input, shape index: {}]
  %s1 = inlined_call_operand.vmem [shape: f32[1,128], index: 1, kind: input, shape index: {}]
  %s2 = inlined_call_operand.vmem [shape: f32[1,128], index: 2, kind: input, shape index: {}]
  %s3 = inlined_call_operand.vmem [shape: f32[32,16], index: 3, kind: output, shape index: {}]
  %s4 = sld [smem:[#allocation0]]
  $region22: #{tpu_custom_call.1} parent=0
    _
  %s6 = ssub.s32 1, %s4
  %s7 = scalar_select 0, %s6, %s4
  // Predicated region
  $region2: #{tpu_custom_call.1} parent=0 // pred_check
    _
  $region3: #{tpu_custom_call.1} parent=0 // pred_check_branch
    %9 = sbr.rel (0) target = $region5
  $region4: #{tpu_custom_call.1} parent=0 // pred_region
    _
  $region5: #{tpu_custom_call.1} parent=0 // pred_fallthru
    _
  // Predicated region
  $region6: #{tpu_custom_call.1} parent=0 // pred_check
    _
  $region7: #{tpu_custom_call.1} parent=0 // pred_check_branch
    %11 = sbr.rel (0) target = $region9
  $region8: #{tpu_custom_call.1} parent=0 // pred_region
    _
  $region9: #{tpu_custom_call.1} parent=0 // pred_fallthru
    _
  // Predicated region
  $region10: #{tpu_custom_call.1} parent=0 // pred_check
    _
  $region11: #{tpu_custom_call.1} parent=0 // pred_check_branch
    %13 = sbr.rel (0) target = $region13
  $region12: #{tpu_custom_call.1} parent=0 // pred_region
    _
  $region13: #{tpu_custom_call.1} parent=0 // pred_fallthru
    _
  %v14 = vld [vmem:[%s0] sm:$0xff]
  %v15 = vld [vmem:[%s0 + $0x8] sm:$0xff]
  %v16 = vld [vmem:[%s0 + $0x10] sm:$0xff]
  %v17 = vld [vmem:[%s0 + $0x18] sm:$0xff]
  %vm18 = vcmask 261120
  %v20 = vsel %vm18, 1.0, 0
  %22 = vmatpush.msra.mxu0 0.0
  %23 = vmatpush.msra.mxu0 0.0
  %24 = vmatpush.msra.mxu0 0.0
  %25 = vmatpush.msra.mxu0 0.0
  %26 = vmatpush.msra.mxu0 0.0
  %27 = vmatpush.msra.mxu0 0.0
  %28 = vmatpush.msra.mxu0 0.0
  %29 = vmatpush.msra.mxu0 0.0
  %30 = vmatpush.msra.mxu0 0.0
  %31 = vmatpush.msra.mxu0 0.0
  %32 = vmatpush.msra.mxu0 0.0
  %33 = vmatpush.msra.mxu0 0.0
  %34 = vmatpush.msra.mxu0 %v17
  %35 = vmatpush.msra.mxu0 %v16
  %36 = vmatpush.msra.mxu0 %v15
  %37 = vmatpush.msra.mxu0 %v14
  %38 = vmatmul.f32.gmra.mxu0 %v20
  %v39 = vpop.f32.mrf.mxu0
  %v40 = vadd.f32 0.0, %v39
  %41 = vdwg.mxu0
  %v42 = vmul.f32 %v14, %v14
  %v43 = vmul.f32 %v15, %v15
  %v44 = vmul.f32 %v16, %v16
  %v45 = vmul.f32 %v17, %v17
  %46 = vmatpush.msra.mxu0 0.0
  %47 = vmatpush.msra.mxu0 0.0
  %48 = vmatpush.msra.mxu0 0.0
  %49 = vmatpush.msra.mxu0 0.0
  %50 = vmatpush.msra.mxu0 0.0
  %51 = vmatpush.msra.mxu0 0.0
  %52 = vmatpush.msra.mxu0 0.0
  %53 = vmatpush.msra.mxu0 0.0
  %54 = vmatpush.msra.mxu0 0.0
  %55 = vmatpush.msra.mxu0 0.0
  %56 = vmatpush.msra.mxu0 0.0
  %57 = vmatpush.msra.mxu0 0.0
  %58 = vmatpush.msra.mxu0 %v45
  %59 = vmatpush.msra.mxu0 %v44
  %60 = vmatpush.msra.mxu0 %v43
  %61 = vmatpush.msra.mxu0 %v42
  %62 = vmatmul.f32.gmra.mxu0 %v20
  %v63 = vpop.f32.mrf.mxu0
  %v64 = vadd.f32 0.0, %v63
  %65 = vdwg.mxu0
  %v66 = vmul.f32 %v40, 0.03125
  %v67 = vmul.f32 %v64, 0.03125
  %v68 = vmul.f32 %v66, %v66
  %v69 = vsub.f32 %v67, %v68
  %v70 = vmax.f32 %v69, 0.0
  %v71 = vadd.f32 %v70, 1e-05
  %v72 = vrsqrt.pop %v71
  %v73 = vmul.f32 %v72, %v71
  %v74 = vmul.f32 %v73, %v72
  %v75 = vmul.f32 0.5, %v74
  %v76 = vsub.f32 1.5, %v75
  %v77 = vmul.f32 %v72, %v76
  %vm78 = vweird.f32 %v71
  %vm79 = vweird.f32 %v72
  %vm80 = vmor %vm78, %vm79
  %v81 = vsel %vm80, %v72, %v77
  %v82 = vld [vmem:[%s1] sm:$0x1]
  %v83 = vmul.f32 %v82, %v81
  %v84 = vld [vmem:[%s2] sm:$0x1]
  %v85 = vmul.f32 %v66, %v83
  %v86 = vsub.f32 %v84, %v85
  %v88 = vperm.slane %v83, 0
  %v90 = vmul.f32 %v14, %v88
  %v91 = vmul.f32 %v15, %v88
  %v92 = vmul.f32 %v16, %v88
  %v93 = vmul.f32 %v17, %v88
  %v95 = vperm.slane %v86, 0
  %v97 = vadd.f32 %v90, %v95
  %v98 = vadd.f32 %v91, %v95
  %v99 = vadd.f32 %v92, %v95
  %v100 = vadd.f32 %v93, %v95
  %101 = vst [vmem:[%s3] sm:$0xff] %v97
  %102 = vst [vmem:[%s3 + $0x8] sm:$0xff] %v98
  %103 = vst [vmem:[%s3 + $0x10] sm:$0xff] %v99
  %104 = vst [vmem:[%s3 + $0x18] sm:$0xff] %v100
  // Predicated region
  $region14: #{tpu_custom_call.1} parent=0 // pred_check
    _
  $region15: #{tpu_custom_call.1} parent=0 // pred_check_branch
    %106 = sbr.rel (0) target = $region17
  $region16: #{tpu_custom_call.1} parent=0 // pred_region
    _
  $region17: #{tpu_custom_call.1} parent=0 // pred_fallthru
    _
  // Predicated region
  $region18: #{tpu_custom_call.1} parent=0 // pred_check
    _
  $region19: #{tpu_custom_call.1} parent=0 // pred_check_branch
    %108 = sbr.rel (0) target = $region21
  $region20: #{tpu_custom_call.1} parent=0 // pred_region
    _
  $region21: #{tpu_custom_call.1} parent=0 // pred_fallthru
    _

</llo_original>
